<compile_context>
chip_gen: v5e
topology: v5e:2x2
jax: 0.10.0
libtpu: 0.0.40
codegen_flags: <defaults>
</compile_context>

<pallas_src>
import jax
import jax.numpy as jnp
from jax.experimental import pallas as pl
from jax.experimental.pallas import tpu as pltpu


def attention_kernel(q_ref, k_ref, uaw_ref, uab_ref, vaw_ref, vab_ref,
                     ctx_ref, w_ref):
    """Additive attention, fully resident in VMEM, one invocation.

    q_ref:   (B, H)      query (single decoder step, squeezed)
    k_ref:   (B, T, H)   key / encoder outputs
    uaw_ref: (H, H)      Ua.weight^T  (so kernel computes x @ W^T)
    uab_ref: (1, H)      Ua.bias
    vaw_ref: (1, H)      Va.weight
    vab_ref: (1, 1)      Va.bias
    ctx_ref: (B, H)      context output
    w_ref:   (B, T)      attention-weights output
    """
    B, T, H = k_ref.shape

    q = q_ref[...]                                   # (B, H)
    k = k_ref[...]                                   # (B, T, H)
    uaw = uaw_ref[...]                               # (H, H)
    uab = uab_ref[...]                               # (1, H)

    # Ua(query): one small MXU matmul.
    uq = jnp.dot(q, uaw, preferred_element_type=jnp.float32) + uab      # (B, H)

    # Ua(key): hoisted into a single (B*T, H) x (H, H) MXU matmul.
    uk = jnp.dot(k.reshape(B * T, H), uaw,
                 preferred_element_type=jnp.float32) + uab              # (B*T, H)
    uk = uk.reshape(B, T, H)

    # Additive attention energies: tanh(Ua(q) + Ua(k))  (broadcast over T).
    s = jnp.tanh(uq[:, None, :] + uk)                                   # (B, T, H)

    # Va(s): project H -> 1 as a lane reduction (avoids an N=1 matmul).
    # The Va bias is a per-row constant; kept for fidelity (softmax-invariant).
    scores = jnp.sum(s * vaw_ref[...][None], axis=-1) + vab_ref[...]    # (B, T)

    # softmax over T (lane axis), numerically stable.
    m = jnp.max(scores, axis=-1, keepdims=True)
    e = jnp.exp(scores - m)
    w = e / jnp.sum(e, axis=-1, keepdims=True)                          # (B, T)

    # context = bmm(weights, key): sum_t w[b, t] * key[b, t, :].
    ctx = jnp.sum(w[:, :, None] * k, axis=1)                            # (B, H)

    ctx_ref[...] = ctx.astype(ctx_ref.dtype)
    w_ref[...] = w.astype(w_ref.dtype)


def attention_forward(query, key, ua_w, ua_b, va_w, va_b):
    """
    query: (B, 1, H)   decoder hidden (single step, as in the reference usage)
    key:   (B, T, H)   encoder outputs
    ua_w:  (H, H)      Ua.weight (PyTorch layout: out x in)
    ua_b:  (H,)        Ua.bias
    va_w:  (1, H)      Va.weight
    va_b:  (1,)        Va.bias
    returns (context (B, 1, H), weights (B, 1, T))
    """
    B, Q, H = query.shape
    assert Q == 1, "kernel assumes a single query step (standard decoder usage)"
    _, T, _ = key.shape

    q2d = query.reshape(B, H).astype(jnp.float32)
    k3d = key.astype(jnp.float32)
    uaw_t = ua_w.T.astype(jnp.float32)               # (H, H)
    uab = ua_b.reshape(1, H).astype(jnp.float32)
    vaw = va_w.reshape(1, H).astype(jnp.float32)
    vab = va_b.reshape(1, 1).astype(jnp.float32)

    vmem = pl.BlockSpec(memory_space=pltpu.MemorySpace.VMEM)
    context, weights = pl.pallas_call(
        attention_kernel,
        out_shape=(
            jax.ShapeDtypeStruct((B, H), jnp.float32),
            jax.ShapeDtypeStruct((B, T), jnp.float32),
        ),
        in_specs=[vmem] * 6,
        out_specs=(vmem, vmem),
    )(q2d, k3d, uaw_t, uab, vaw, vab)

    # Free reshapes back to the PyTorch return shapes (no transposes needed).
    return context.reshape(B, 1, H), weights.reshape(B, 1, T)


def _reference_forward(query, key, ua_w, ua_b, va_w, va_b):
    """Pure-JAX reference matching the PyTorch Attention.forward semantics."""
    uq = query @ ua_w.T + ua_b                       # (B, 1, H)
    uk = key @ ua_w.T + ua_b                         # (B, T, H)
    s = jnp.tanh(uq + uk)                            # (B, T, H)
    scores = s @ va_w.T + va_b                       # (B, T, 1)
    scores = jnp.transpose(scores, (0, 2, 1))        # (B, 1, T)
    weights = jax.nn.softmax(scores, axis=-1)        # (B, 1, T)
    context = jnp.einsum("bqt,bth->bqh", weights, key)
    return context, weights


if __name__ == "__main__":
    # Small shapes consistent with the module: hidden=32, batch=2, seq=8.
    hidden, B, T = 32, 2, 8

    key_rng = jax.random.PRNGKey(0)
    k_q, k_k, k_uw, k_ub, k_vw, k_vb = jax.random.split(key_rng, 6)

    bound = 1.0 / jnp.sqrt(hidden)
    query = jax.random.normal(k_q, (B, 1, hidden), jnp.float32)
    key = jax.random.normal(k_k, (B, T, hidden), jnp.float32)
    ua_w = jax.random.uniform(k_uw, (hidden, hidden), jnp.float32, -bound, bound)
    ua_b = jax.random.uniform(k_ub, (hidden,), jnp.float32, -bound, bound)
    va_w = jax.random.uniform(k_vw, (1, hidden), jnp.float32, -bound, bound)
    va_b = jax.random.uniform(k_vb, (1,), jnp.float32, -bound, bound)
    # NOTE: the module also defines self.Wa, but forward() never uses it,
    # so no Wa parameters are needed for the forward pass.

    context, weights = attention_forward(query, key, ua_w, ua_b, va_w, va_b)
    context, weights = jax.block_until_ready((context, weights))

    ref_ctx, ref_w = _reference_forward(query, key, ua_w, ua_b, va_w, va_b)
    assert context.shape == (B, 1, hidden)
    assert weights.shape == (B, 1, T)
    assert jnp.allclose(jnp.sum(weights, axis=-1), 1.0, atol=1e-5)
    assert jnp.allclose(context, ref_ctx, atol=2e-5, rtol=2e-5)
    assert jnp.allclose(weights, ref_w, atol=2e-5, rtol=2e-5)

    print("KERNEL_OK")
</pallas_src>

<mosaic_0001>
module attributes {stable_mosaic.version = 11 : i64} {
  func.func @attention_kernel(%arg0: memref<2x32xf32, #tpu.memory_space<vmem>>, %arg1: memref<2x8x32xf32, #tpu.memory_space<vmem>>, %arg2: memref<32x32xf32, #tpu.memory_space<vmem>>, %arg3: memref<1x32xf32, #tpu.memory_space<vmem>>, %arg4: memref<1x32xf32, #tpu.memory_space<vmem>>, %arg5: memref<1x1xf32, #tpu.memory_space<vmem>>, %arg6: memref<2x32xf32, #tpu.memory_space<vmem>>, %arg7: memref<2x8xf32, #tpu.memory_space<vmem>>) attributes {dimension_semantics = [], scalar_prefetch = 0 : i64, scratch_operands = 0 : i64, tpu.core_type = #tpu.core_type<tc>} {
    %c0 = arith.constant 0 : index
    %c0_0 = arith.constant 0 : index
    %0 = vector.load %arg0[%c0, %c0_0] : memref<2x32xf32, #tpu.memory_space<vmem>>, vector<2x32xf32>
    %c0_1 = arith.constant 0 : index
    %c0_2 = arith.constant 0 : index
    %c0_3 = arith.constant 0 : index
    %1 = vector.load %arg1[%c0_1, %c0_2, %c0_3] : memref<2x8x32xf32, #tpu.memory_space<vmem>>, vector<2x8x32xf32>
    %c0_4 = arith.constant 0 : index
    %c0_5 = arith.constant 0 : index
    %2 = vector.load %arg2[%c0_4, %c0_5] : memref<32x32xf32, #tpu.memory_space<vmem>>, vector<32x32xf32>
    %c0_6 = arith.constant 0 : index
    %c0_7 = arith.constant 0 : index
    %3 = vector.load %arg3[%c0_6, %c0_7] : memref<1x32xf32, #tpu.memory_space<vmem>>, vector<1x32xf32>
    %cst = arith.constant dense<0.000000e+00> : vector<2x32xf32>
    %4 = tpu.matmul %0, %2, %cst {dimension_numbers = #tpu.dot_dimension_numbers<[1], [0], [0], [1], [0, 0, 1, 1], [], []>} : vector<2x32xf32>, vector<32x32xf32>, vector<2x32xf32> -> vector<2x32xf32>
    %5 = vector.broadcast %3 : vector<1x32xf32> to vector<2x32xf32>
    %6 = arith.addf %4, %5 : vector<2x32xf32>
    %7 = vector.shape_cast %1 : vector<2x8x32xf32> to vector<16x32xf32>
    %cst_8 = arith.constant dense<0.000000e+00> : vector<16x32xf32>
    %8 = tpu.matmul %7, %2, %cst_8 {dimension_numbers = #tpu.dot_dimension_numbers<[1], [0], [0], [1], [0, 0, 1, 1], [], []>} : vector<16x32xf32>, vector<32x32xf32>, vector<16x32xf32> -> vector<16x32xf32>
    %9 = vector.broadcast %3 : vector<1x32xf32> to vector<16x32xf32>
    %10 = arith.addf %8, %9 : vector<16x32xf32>
    %11 = vector.shape_cast %10 : vector<16x32xf32> to vector<2x8x32xf32>
    %12 = vector.shape_cast %6 : vector<2x32xf32> to vector<2x1x32xf32>
    %13 = vector.broadcast %12 : vector<2x1x32xf32> to vector<2x8x32xf32>
    %14 = arith.addf %13, %11 : vector<2x8x32xf32>
    %15 = math.tanh %14 : vector<2x8x32xf32>
    %c0_9 = arith.constant 0 : index
    %c0_10 = arith.constant 0 : index
    %16 = vector.load %arg4[%c0_9, %c0_10] : memref<1x32xf32, #tpu.memory_space<vmem>>, vector<1x32xf32>
    %17 = vector.shape_cast %16 : vector<1x32xf32> to vector<1x1x32xf32>
    %18 = vector.broadcast %17 : vector<1x1x32xf32> to vector<2x8x32xf32>
    %19 = arith.mulf %15, %18 : vector<2x8x32xf32>
    %cst_11 = arith.constant dense<0.000000e+00> : vector<2x8xf32>
    %20 = vector.multi_reduction <add>, %19, %cst_11 [2] : vector<2x8x32xf32> to vector<2x8xf32>
    %c0_12 = arith.constant 0 : index
    %c0_13 = arith.constant 0 : index
    %21 = vector.load %arg5[%c0_12, %c0_13] : memref<1x1xf32, #tpu.memory_space<vmem>>, vector<1x1xf32>
    %22 = vector.broadcast %21 : vector<1x1xf32> to vector<2x8xf32>
    %23 = arith.addf %20, %22 : vector<2x8xf32>
    %cst_14 = arith.constant dense<0xFF800000> : vector<2xf32>
    %24 = vector.multi_reduction <maximumf>, %23, %cst_14 [1] : vector<2x8xf32> to vector<2xf32>
    %25 = vector.shape_cast %24 : vector<2xf32> to vector<2x1xf32>
    %26 = vector.broadcast %25 : vector<2x1xf32> to vector<2x8xf32>
    %27 = arith.subf %23, %26 : vector<2x8xf32>
    %28 = math.exp %27 : vector<2x8xf32>
    %cst_15 = arith.constant dense<0.000000e+00> : vector<2xf32>
    %29 = vector.multi_reduction <add>, %28, %cst_15 [1] : vector<2x8xf32> to vector<2xf32>
    %30 = vector.shape_cast %29 : vector<2xf32> to vector<2x1xf32>
    %31 = vector.broadcast %30 : vector<2x1xf32> to vector<2x8xf32>
    %32 = arith.divf %28, %31 : vector<2x8xf32>
    %33 = vector.shape_cast %32 : vector<2x8xf32> to vector<2x8x1xf32>
    %34 = vector.broadcast %33 : vector<2x8x1xf32> to vector<2x8x32xf32>
    %35 = arith.mulf %34, %1 : vector<2x8x32xf32>
    %cst_16 = arith.constant dense<0.000000e+00> : vector<2x32xf32>
    %36 = vector.multi_reduction <add>, %35, %cst_16 [1] : vector<2x8x32xf32> to vector<2x32xf32>
    %c0_17 = arith.constant 0 : index
    %c0_18 = arith.constant 0 : index
    %37 = vector.load %arg6[%c0_17, %c0_18] : memref<2x32xf32, #tpu.memory_space<vmem>>, vector<2x32xf32>
    tpu.vector_store %arg6[%c0_17, %c0_18], %36 {strides = array<i32>} : memref<2x32xf32, #tpu.memory_space<vmem>>, vector<2x32xf32>,
    %c0_19 = arith.constant 0 : index
    %c0_20 = arith.constant 0 : index
    %38 = vector.load %arg7[%c0_19, %c0_20] : memref<2x8xf32, #tpu.memory_space<vmem>>, vector<2x8xf32>
    tpu.vector_store %arg7[%c0_19, %c0_20], %32 {strides = array<i32>} : memref<2x8xf32, #tpu.memory_space<vmem>>, vector<2x8xf32>,
    return
  }
}

</mosaic_0001>

<llo_original>
// kernel: tpu_custom_call.1
$region0: #{tpu_custom_call.1}
  #allocation0 [shape = 'u32[]', space=smem, size = 0x4, offset = 0x4, fixed_abs, tag = 'smem constant byte address 0x4 - core index']
  #allocation1 [shape = 'u32[72,128]{1,0:T(1,128)}', space=vmem, size = 0x9000, scoped, tag = 'internal scratch']
  #allocation2 [shape = 'f32[1,1]{1,0:T(1,128)S(1)}', space=vmem, size = 0x200, scoped, tag = 'scoped memory for tpu_custom_call.1']
  %s0 = inlined_call_operand.vmem [shape: f32[2,32], index: 0, kind: input, shape index: {}]
  %s1 = inlined_call_operand.hbm [shape: f32[2,8,32], index: 1, kind: input, shape index: {}]
  %s2 = inlined_call_operand.hbm [shape: f32[32,32], index: 2, kind: input, shape index: {}]
  %s3 = inlined_call_operand.vmem [shape: f32[1,32], index: 3, kind: input, shape index: {}]
  %s4 = inlined_call_operand.vmem [shape: f32[1,32], index: 4, kind: input, shape index: {}]
  %s5 = inlined_call_operand.<no memory space> [shape: f32[1,1], index: 5, kind: input, shape index: {}]
  %s6 = inlined_call_operand.hbm [shape: f32[2,32], index: 6, kind: output, shape index: {0}]
  %s7 = inlined_call_operand.hbm [shape: f32[2,8], index: 7, kind: output, shape index: {1}]
  %8 = xla_tuple %s6, %s7
  %s9 = sld [smem:[#allocation0]]
  $region50: #{tpu_custom_call.1} parent=0
    _
  %s11 = ssub.s32 1, %s9
  %s12 = scalar_select 0, %s11, %s9
  %v13 = vstv %s5
  %14 = vst [vmem:[#allocation2] sm:$0x1] %v13
  $region1: #{tpu_custom_call.1} parent=0
    #allocation3 [shape = 'u8[8192]{0}', space=vmem, size = 0x2000, scoped, tag = 'input window, operand 1, single buffered']
    #allocation4 [shape = 's32[1]{0}', space=sflag, size = 0x4, scoped, tag = 'scoped memory for tpu_custom_call.1']
    #allocation5 [shape = 's32[1]{0}', space=sflag, size = 0x4, scoped, tag = 'scoped memory for tpu_custom_call.1']
    #allocation6 [shape = 'u8[16384]{0}', space=vmem, size = 0x4000, scoped, tag = 'input window, operand 2, single buffered']
    #allocation7 [shape = 's32[1]{0}', space=sflag, size = 0x4, scoped, tag = 'scoped memory for tpu_custom_call.1']
    #allocation8 [shape = 'u8[1024]{0}', space=vmem, size = 0x400, scoped, tag = 'output window, operand 0, single buffered']
    #allocation9 [shape = 'u8[1024]{0}', space=vmem, size = 0x400, scoped, tag = 'output window, operand 1, single buffered']
    #allocation10 [shape = 's32[1]{0}', space=sflag, size = 0x4, scoped, tag = 'scoped memory for tpu_custom_call.1']
    %15 = vsyncpa [#allocation4], 0
    %16 = vsyncpa [#allocation7], 0
    %17 = vsyncpa [#allocation5], 0
    %18 = vsyncpa [#allocation10], 0
    // Predicated region
    $region2: #{tpu_custom_call.1} parent=1 // pred_check
      _
    $region3: #{tpu_custom_call.1} parent=1 // pred_check_branch
      %20 = sbr.rel (0) target = $region5
    $region4: #{tpu_custom_call.1} parent=1 // pred_region
      _
    $region5: #{tpu_custom_call.1} parent=1 // pred_fallthru
      _
    // Predicated region
    $region6: #{tpu_custom_call.1} parent=1 // pred_check
      _
    $region7: #{tpu_custom_call.1} parent=1 // pred_check_branch
      %22 = sbr.rel (0) target = $region9
    $region8: #{tpu_custom_call.1} parent=1 // pred_region
      %24 = vsyncadd [#allocation4], 0
      %s25 = sshll.u32 %s1, 4
      %s26 = int_to_ptr.hbm [resolvable:$true] %s25
      %s27 = sshll.u32 [#allocation3], 4
      %s28 = int_to_ptr.vmem [resolvable:$true] %s27
      %33 = dma.hbm_to_vmem [thread:$0]  %s26, 256, %s28, [#allocation4], 128, 128, 8
    $region9: #{tpu_custom_call.1} parent=1 // pred_fallthru
      _
    // Predicated region
    $region10: #{tpu_custom_call.1} parent=1 // pred_check
      _
    $region11: #{tpu_custom_call.1} parent=1 // pred_check_branch
      %35 = sbr.rel (0) target = $region13
    $region12: #{tpu_custom_call.1} parent=1 // pred_region
      %37 = vsyncadd [#allocation7], 0
      %s38 = sshll.u32 %s2, 4
      %s39 = int_to_ptr.hbm [resolvable:$true] %s38
      %s40 = sshll.u32 [#allocation6], 4
      %s41 = int_to_ptr.vmem [resolvable:$true] %s40
      %46 = dma.hbm_to_vmem [thread:$0]  %s39, 512, %s41, [#allocation7], 128, 128, 8
    $region13: #{tpu_custom_call.1} parent=1 // pred_fallthru
      _
    // Predicated region
    $region14: #{tpu_custom_call.1} parent=1 // pred_check
      _
    $region15: #{tpu_custom_call.1} parent=1 // pred_check_branch
      %48 = sbr.rel (0) target = $region17
    $region16: #{tpu_custom_call.1} parent=1 // pred_region
      _
    $region17: #{tpu_custom_call.1} parent=1 // pred_fallthru
      _
    // Predicated region
    $region18: #{tpu_custom_call.1} parent=1 // pred_check
      _
    $region19: #{tpu_custom_call.1} parent=1 // pred_check_branch
      %50 = sbr.rel (0) target = $region21
    $region20: #{tpu_custom_call.1} parent=1 // pred_region
      _
    $region21: #{tpu_custom_call.1} parent=1 // pred_fallthru
      _
    // Predicated region
    $region22: #{tpu_custom_call.1} parent=1 // pred_check
      _
    $region23: #{tpu_custom_call.1} parent=1 // pred_check_branch
      %52 = sbr.rel (0) target = $region25
    $region24: #{tpu_custom_call.1} parent=1 // pred_region
      _
    $region25: #{tpu_custom_call.1} parent=1 // pred_fallthru
      _
    // Predicated region
    $region26: #{tpu_custom_call.1} parent=1 // pred_check
      _
    $region27: #{tpu_custom_call.1} parent=1 // pred_check_branch
      %54 = sbr.rel (0) target = $region29
    $region28: #{tpu_custom_call.1} parent=1 // pred_region
      %56 = dma.done [#allocation4], 256
    $region29: #{tpu_custom_call.1} parent=1 // pred_fallthru
      _
    // Predicated region
    $region30: #{tpu_custom_call.1} parent=1 // pred_check
      _
    $region31: #{tpu_custom_call.1} parent=1 // pred_check_branch
      %58 = sbr.rel (0) target = $region33
    $region32: #{tpu_custom_call.1} parent=1 // pred_region
      %60 = dma.done [#allocation7], 512
    $region33: #{tpu_custom_call.1} parent=1 // pred_fallthru
      _
    %v61 = vld [vmem:[%s0] sm:$0x3]
    %v62 = vld [vmem:[#allocation3] sm:$0xff]
    %v63 = vld [vmem:[#allocation3 + $0x8] sm:$0xff]
    %v64 = vld [vmem:[#allocation6] sm:$0xff]
    %v65 = vld [vmem:[#allocation6 + $0x8] sm:$0xff]
    %v66 = vld [vmem:[#allocation6 + $0x10] sm:$0xff]
    %v67 = vld [vmem:[#allocation6 + $0x18] sm:$0xff]
    %v68 = vld [vmem:[%s3] sm:$0x1]
    %v70 = vperm.slane %v68, 0
    %vm72 = vcmask 261120
    %v74 = vsel %vm72, %v61, 0
    %76 = vmatpush.msra.mxu0 0.0
    %77 = vmatpush.msra.mxu0 0.0
    %78 = vmatpush.msra.mxu0 0.0
    %79 = vmatpush.msra.mxu0 0.0
    %80 = vmatpush.msra.mxu0 0.0
    %81 = vmatpush.msra.mxu0 0.0
    %82 = vmatpush.msra.mxu0 0.0
    %83 = vmatpush.msra.mxu0 0.0
    %84 = vmatpush.msra.mxu0 0.0
    %85 = vmatpush.msra.mxu0 0.0
    %86 = vmatpush.msra.mxu0 0.0
    %87 = vmatpush.msra.mxu0 0.0
    %88 = vmatpush.msra.mxu0 %v67
    %89 = vmatpush.msra.mxu0 %v66
    %90 = vmatpush.msra.mxu0 %v65
    %91 = vmatpush.msra.mxu0 %v64
    %92 = vmatmul.f32.gmra.mxu0 %v74
    %v93 = vpop.f32.mrf.mxu0
    %v94 = vadd.f32 %v70, %v93
    %95 = vdwg.mxu0
    %v97 = vsel %vm72, %v62, 0
    %v100 = vsel %vm72, %v63, 0
    %102 = vmatpush.msra.mxu0 0.0
    %103 = vmatpush.msra.mxu0 0.0
    %104 = vmatpush.msra.mxu0 0.0
    %105 = vmatpush.msra.mxu0 0.0
    %106 = vmatpush.msra.mxu0 0.0
    %107 = vmatpush.msra.mxu0 0.0
    %108 = vmatpush.msra.mxu0 0.0
    %109 = vmatpush.msra.mxu0 0.0
    %110 = vmatpush.msra.mxu0 0.0
    %111 = vmatpush.msra.mxu0 0.0
    %112 = vmatpush.msra.mxu0 0.0
    %113 = vmatpush.msra.mxu0 0.0
    %114 = vmatpush.msra.mxu0 %v67
    %115 = vmatpush.msra.mxu0 %v66
    %116 = vmatpush.msra.mxu0 %v65
    %117 = vmatpush.msra.mxu0 %v64
    %118 = vmatmul.f32.gmra.mxu0 %v97
    %v119 = vpop.f32.mrf.mxu0
    %v120 = vadd.f32 %v70, %v119
    %121 = vmatmul.f32.gmra.mxu0 %v100
    %v122 = vpop.f32.mrf.mxu0
    %v123 = vadd.f32 %v70, %v122
    %124 = vdwg.mxu0
    %v126 = vrot.slane %v94, 1
    %v127 = vperm.slane %v94, 0
    %v128 = vperm.slane %v126, 0
    %v131 = vadd.f32 %v127, %v120
    %v132 = vadd.f32 %v128, %v123
    %v133 = vtanh.pop %v131
    %v134 = vtanh.pop %v132
    %v135 = vld [vmem:[%s4] sm:$0x1]
    %v137 = vperm.slane %v135, 0
    %v139 = vmul.f32 %v133, %v137
    %v140 = vmul.f32 %v134, %v137
    %v141 = vsel %vm72, %v139, 0.0
    %142 = vadd.xlane.f32.xlu0 %v141
    %v143 = vpop.xlane.xlu0 %142
    %v144 = vsel %vm72, %v140, 0.0
    %145 = vadd.xlane.f32.xlu0 %v144
    %v146 = vpop.xlane.xlu0 %145
    %v147 = vld [vmem:[#allocation2] sm:$0x1]
    %v149 = vperm.slane %v147, 0
    %150 = vset.pattern.permute.xlu0 0
    %151 = vperm.xlu0 %150, %v149
    %v152 = vpop.permute.xlu0 %151
    %v154 = vadd.f32 %v143, %v152
    %v155 = vadd.f32 %v146, %v152
    %v158 = vlaneseq
    %v159 = vand.u32 %v158, 127
    %v160 = vperm.slane %v154, %v159
    %v161 = vperm.slane %v155, %v159
    %vm162 = vcmask 1041409
    %v163 = vsel %vm162, %v161, %v160
    %vm165 = vcmask 58368
    %v166 = vsel %vm165, %v163, -inf
    %167 = vmax.xlane.f32.xlu0 %v166
    %v168 = vpop.xlane.xlu0 %167
    %v170 = vperm.slane %v168, 0
    %v171 = vperm.slane %v168, 1
    %v174 = vsub.f32 %v154, %v170
    %v175 = vsub.f32 %v155, %v171
    %v176 = vmul.f32 %v174, 1.442695
    %v177 = vpow.pop %v176
    %v178 = vmul.f32 %v175, 1.442695
    %v179 = vpow.pop %v178
    %182 = vset.pattern.permute.xlu0 0
    %183 = vperm.xlu0 %182, %v177
    %v184 = vpop.permute.xlu0 %183
    %185 = vset.pattern.permute.xlu0 0
    %186 = vperm.xlu0 %185, %v179
    %v187 = vpop.permute.xlu0 %186
    %v188 = vperm.slane %v184, %v159
    %v189 = vperm.slane %v187, %v159
    %v190 = vsel %vm162, %v189, %v188
    %v192 = vsel %vm165, %v190, 0.0
    %193 = vadd.xlane.f32.xlu0 %v192
    %v194 = vpop.xlane.xlu0 %193
    %v196 = vperm.slane %v194, 0
    %v197 = vperm.slane %v194, 1
    %v200 = vrcp.pop %v196
    %v201 = vmul.f32 %v196, %v200
    %v202 = vsub.f32 1.0, %v201
    %v203 = vmul.f32 %v200, %v202
    %v204 = vadd.f32 %v200, %v203
    %vm205 = vweird.f32 %v196
    %vm206 = vweird.f32 %v200
    %vm207 = vmor %vm205, %vm206
    %v208 = vsel %vm207, %v200, %v204
    %v209 = vand.u32 2147483647, %v196
    %vm210 = vcmp.eq.f32.partialorder %v209, 8.507059e+37
    %v211 = vand.u32 %v196, 2147483648
    %v212 = vor.u32 1.1754944e-38, %v211
    %v213 = vsel %vm210, %v212, %v208
    %v214 = vmul.f32 %v177, %v213
    %v215 = vrcp.pop %v197
    %v216 = vmul.f32 %v197, %v215
    %v217 = vsub.f32 1.0, %v216
    %v218 = vmul.f32 %v215, %v217
    %v219 = vadd.f32 %v215, %v218
    %vm220 = vweird.f32 %v197
    %vm221 = vweird.f32 %v215
    %vm222 = vmor %vm220, %vm221
    %v223 = vsel %vm222, %v215, %v219
    %v224 = vand.u32 2147483647, %v197
    %vm225 = vcmp.eq.f32.partialorder %v224, 8.507059e+37
    %v226 = vand.u32 %v197, 2147483648
    %v227 = vor.u32 1.1754944e-38, %v226
    %v228 = vsel %vm225, %v227, %v223
    %v229 = vmul.f32 %v179, %v228
    %231 = vset.pattern.permute.xlu0 0
    %232 = vperm.xlu0 %231, %v214
    %v233 = vpop.permute.xlu0 %232
    %236 = vset.pattern.permute.xlu0 0
    %237 = vperm.xlu0 %236, %v229
    %v238 = vpop.permute.xlu0 %237
    %v240 = vmul.f32 %v233, %v62
    %v241 = vmul.f32 %v238, %v63
    %v242 = vsel %vm72, %v240, 0.0
    %v243 = vrot.slane %v242, 4
    %v244 = vadd.f32 %v242, %v243
    %v245 = vrot.slane %v244, 2
    %v246 = vadd.f32 %v244, %v245
    %v247 = vrot.slane %v246, 1
    %v248 = vadd.f32 %v246, %v247
    %v249 = vsel %vm72, %v241, 0.0
    %v250 = vrot.slane %v249, 4
    %v251 = vadd.f32 %v249, %v250
    %v252 = vrot.slane %v251, 2
    %v253 = vadd.f32 %v251, %v252
    %v254 = vrot.slane %v253, 1
    %v255 = vadd.f32 %v253, %v254
    %v258 = vsel %vm162, %v255, %v248
    %vm260 = vcmask 254976
    %261 = vst.msk [vmem:[#allocation8] sm:$0x3] %vm260, %v258
    %v262 = vperm.slane %v233, %v159
    %v263 = vperm.slane %v238, %v159
    %v264 = vsel %vm162, %v263, %v262
    %266 = vst.msk [vmem:[#allocation9] sm:$0x3] %vm165, %v264
    // Predicated region
    $region34: #{tpu_custom_call.1} parent=1 // pred_check
      _
    $region35: #{tpu_custom_call.1} parent=1 // pred_check_branch
      %268 = sbr.rel (0) target = $region37
    $region36: #{tpu_custom_call.1} parent=1 // pred_region
      %270 = vsyncadd [#allocation5], 0
      %s272 = sshll.u32 [#allocation8], 4
      %s273 = int_to_ptr.vmem [resolvable:$true] %s272
      %s274 = sshll.u32 %s6, 4
      %s275 = int_to_ptr.hbm [resolvable:$true] %s274
      %277 = dma.vmem_to_hbm [thread:$0]  %s273, 32, %s275, [#allocation5]
    $region37: #{tpu_custom_call.1} parent=1 // pred_fallthru
      _
    // Predicated region
    $region38: #{tpu_custom_call.1} parent=1 // pred_check
      _
    $region39: #{tpu_custom_call.1} parent=1 // pred_check_branch
      %279 = sbr.rel (0) target = $region41
    $region40: #{tpu_custom_call.1} parent=1 // pred_region
      %281 = vsyncadd [#allocation10], 0
      %s283 = sshll.u32 [#allocation9], 4
      %s284 = int_to_ptr.vmem [resolvable:$true] %s283
      %s285 = sshll.u32 %s7, 4
      %s286 = int_to_ptr.hbm [resolvable:$true] %s285
      %288 = dma.vmem_to_hbm [thread:$0]  %s284, 32, %s286, [#allocation10]
    $region41: #{tpu_custom_call.1} parent=1 // pred_fallthru
      _
    // Predicated region
    $region42: #{tpu_custom_call.1} parent=1 // pred_check
      _
    $region43: #{tpu_custom_call.1} parent=1 // pred_check_branch
      %290 = sbr.rel (0) target = $region45
    $region44: #{tpu_custom_call.1} parent=1 // pred_region
      %292 = dma.done [#allocation5], 32
    $region45: #{tpu_custom_call.1} parent=1 // pred_fallthru
      _
    // Predicated region
    $region46: #{tpu_custom_call.1} parent=1 // pred_check
      _
    $region47: #{tpu_custom_call.1} parent=1 // pred_check_branch
      %294 = sbr.rel (0) target = $region49
    $region48: #{tpu_custom_call.1} parent=1 // pred_region
      %296 = dma.done [#allocation10], 32
    $region49: #{tpu_custom_call.1} parent=1 // pred_fallthru
      _
    %297 = vsyncpa [#allocation4], 1
    %298 = vsyncpa [#allocation7], 1
    %299 = vsyncpa [#allocation5], 1
    %300 = vsyncpa [#allocation10], 1

</llo_original>
